<compile_context>
chip_gen: v7x
topology: tpu7x:2x2x1
jax: 0.10.0
libtpu: 0.0.40
codegen_flags: <defaults>
</compile_context>

<pallas_src>
import jax
import jax.numpy as jnp
from jax import lax
from jax.experimental import pallas as pl
from jax.experimental.pallas import tpu as pltpu

BN_EPS = 1e-5
C_PAD = 128           # lane-pad the 26 output channels to a full vreg lane group


# ---------------------------------------------------------------------------
# Kernel A: 1x1 conv (row-tiled matmul over channels, bf16 in / f32 acc) +
# per-tile partial sums / sums-of-squares for the BatchNorm batch statistics.
# Each grid step writes its own stats block, so the grid axis is fully
# parallel (megacore / v7x safe).  The conv result is handed to pass 2 in
# bf16; the stats are taken from the f32 accumulator so BN is unaffected.
# ---------------------------------------------------------------------------
def conv1x1_stats_kernel(x_ref, w_ref, y_ref, stats_ref):
    # (tile_rows, 512) bf16 @ (512, 128) bf16 -> f32 on the MXU.
    y = jnp.dot(x_ref[...], w_ref[...], preferred_element_type=jnp.float32)
    y_ref[...] = y.astype(jnp.bfloat16)
    # Per-tile partials; two plain slice stores (no concatenate / XLU traffic).
    stats_ref[0:1, :] = jnp.sum(y, axis=0, keepdims=True)
    stats_ref[1:2, :] = jnp.sum(y * y, axis=0, keepdims=True)


# ---------------------------------------------------------------------------
# Kernel B: BatchNorm (precomputed per-channel scale/shift, packed as one
# (2, 128) block) + sigmoid.  Writes the 26 real channels directly (masked
# lane stores), so there is no post-kernel slice pass.
# ---------------------------------------------------------------------------
def bn_sigmoid_kernel(y_ref, ss_ref, o_ref):
    z = y_ref[...].astype(jnp.float32) * ss_ref[0:1, :] + ss_ref[1:2, :]
    o_ref[...] = jax.nn.sigmoid(z)[:, : o_ref.shape[-1]]


def _plan_tiles(rows, cap=2048):
    """Return (tile_rows, padded_rows).

    Picks the biggest sublane-aligned divisor tile <= cap that still leaves
    >= 2 grid steps (so the 'parallel' grid axis shards across v7x's two
    TensorCores).  Irregular/tiny row counts fall back to zero-padding instead
    of a full-rows tile (keeps the block auto-pipelineable and VMEM-safe on
    v7x's 64 MiB VMEM).
    """
    lo = max(8, min(rows // 2, 128))
    for cand in (2048, 1024, 512, 256, 128, 64, 32, 16, 8):
        if lo <= cand <= cap and rows % cand == 0 and rows // cand >= 2:
            return cand, rows
    tile = min(cap, 256)
    padded = pl.cdiv(rows, tile) * tile
    return tile, padded


# ---------------------------------------------------------------------------
# Wrapper: yolo head (Conv2d(512,26,1) + BN(batch stats) + sigmoid) in NHWC.
# ---------------------------------------------------------------------------
def yolo_head(feat_nhwc, w, b, gamma, beta, *, tile_cap=2048):
    """feat_nhwc: (N, H, W, 512) (ideally bf16) -> (N, H, W, 26) f32."""
    N, H, W, C = feat_nhwc.shape
    Cout = w.shape[1]
    rows = N * H * W
    tile_rows, rows_padded = _plan_tiles(rows, tile_cap)
    num_tiles = rows_padded // tile_rows

    x_flat = feat_nhwc.reshape(rows, C)
    if x_flat.dtype != jnp.bfloat16:
        # Not taken in this pipeline (features_fn already emits bf16); kept so
        # the head also accepts f32 features.
        x_flat = x_flat.astype(jnp.bfloat16)
    if rows_padded != rows:
        # Zero rows contribute nothing to the BN sums (we divide by the true
        # row count below); padded output rows are sliced off at the end.
        x_flat = jnp.pad(x_flat, ((0, rows_padded - rows), (0, 0)))

    w_pad = jnp.zeros((C, C_PAD), jnp.bfloat16).at[:, :Cout].set(
        w.astype(jnp.bfloat16))
    del b  # conv bias cancels exactly under training-mode BN (mean-subtracted)

    # --- pass 1: 1x1 conv + per-tile stats ----------------------------------
    y_flat, partial_stats = pl.pallas_call(
        conv1x1_stats_kernel,
        out_shape=(
            jax.ShapeDtypeStruct((rows_padded, C_PAD), jnp.bfloat16),
            jax.ShapeDtypeStruct((num_tiles, 2, C_PAD), jnp.float32),
        ),
        grid_spec=pltpu.PrefetchScalarGridSpec(
            num_scalar_prefetch=0,
            grid=(num_tiles,),
            in_specs=[
                pl.BlockSpec((tile_rows, C), lambda i: (i, 0)),
                pl.BlockSpec((C, C_PAD), lambda i: (0, 0)),
            ],
            out_specs=[
                pl.BlockSpec((tile_rows, C_PAD), lambda i: (i, 0)),
                pl.BlockSpec((None, 2, C_PAD), lambda i: (i, 0, 0)),
            ],
        ),
        compiler_params=pltpu.CompilerParams(
            dimension_semantics=("parallel",)),
    )(x_flat, w_pad)

    # --- tiny host-side reduction + BN scale/shift precompute (O(128) work) --
    # NOTE: E[y^2] - mean^2 in f32 can lose digits for huge row counts with
    # |mean| >> std; the clamp guards NaN. (A Chan-style (count, mean, M2)
    # combine would be the higher-precision alternative.)
    stats = jnp.sum(partial_stats, axis=0)                      # (2, C_PAD)
    mean = stats[0] / rows
    var = jnp.maximum(stats[1] / rows - mean * mean, 0.0)       # biased, clamped
    inv_std = lax.rsqrt(var + BN_EPS)
    gamma_pad = jnp.zeros((C_PAD,), jnp.float32).at[:Cout].set(gamma)
    beta_pad = jnp.zeros((C_PAD,), jnp.float32).at[:Cout].set(beta)
    scale = gamma_pad * inv_std
    shift = beta_pad - mean * scale
    ss = jnp.stack([scale, shift], axis=0)                      # (2, C_PAD)

    # --- pass 2: fused scale/shift + sigmoid, direct (rows, 26) output -------
    out_flat = pl.pallas_call(
        bn_sigmoid_kernel,
        out_shape=jax.ShapeDtypeStruct((rows_padded, Cout), jnp.float32),
        grid_spec=pltpu.PrefetchScalarGridSpec(
            num_scalar_prefetch=0,
            grid=(num_tiles,),
            in_specs=[
                pl.BlockSpec((tile_rows, C_PAD), lambda i: (i, 0)),
                pl.BlockSpec((2, C_PAD), lambda i: (0, 0)),
            ],
            out_specs=pl.BlockSpec((tile_rows, Cout), lambda i: (i, 0)),
        ),
        compiler_params=pltpu.CompilerParams(
            dimension_semantics=("parallel",)),
    )(y_flat, ss)

    if rows_padded != rows:
        out_flat = out_flat[:rows]
    # already NHWC -> matches torch's permute(0, 2, 3, 1)
    return out_flat.reshape(N, H, W, Cout)


# ---------------------------------------------------------------------------
# Stand-in `features` sub-module (injected in the PyTorch module, so kept as
# plain-JAX glue here): 3x3 conv (Cin -> 512, SAME) + ReLU + 2x2 maxpool.
# Emits bf16 so the convert fuses into the conv/ReLU epilogue and the Pallas
# head reads bf16 with no standalone cast pass over HBM.
# TODO(synk): the real `features` is constructed outside VGG_Improve; swap in
# the actual VGG trunk here if/when it is specified.
# ---------------------------------------------------------------------------
def features_fn(x_nhwc, conv_w, conv_b):
    y = lax.conv_general_dilated(
        x_nhwc, conv_w,
        window_strides=(1, 1), padding="SAME",
        dimension_numbers=("NHWC", "HWIO", "NHWC"))
    y = jax.nn.relu(y + conv_b.reshape(1, 1, 1, -1)).astype(jnp.bfloat16)
    y = lax.reduce_window(
        y, jnp.array(-jnp.inf, jnp.bfloat16), lax.max,
        window_dimensions=(1, 2, 2, 1),
        window_strides=(1, 2, 2, 1),
        padding="VALID")
    return y


def vgg_improve_forward(x_nhwc, params):
    feat = features_fn(x_nhwc, params["feat_w"], params["feat_b"])
    return yolo_head(feat, params["yolo_w"], params["yolo_b"],
                     params["bn_gamma"], params["bn_beta"])


# Pure-JAX reference of the yolo head.  It consumes the same bf16 features and
# bf16-cast weights as the kernel, but keeps the conv result, BN and sigmoid
# entirely in f32 (bias included -> proves the bias cancels).  The tolerance
# below therefore only has to absorb the kernel's bf16 pass-1 -> pass-2
# handoff (<= 0.5 bf16 ulp on y before the BN scale).
def yolo_head_ref(feat, w, b, gamma, beta):
    N, H, W, C = feat.shape
    x = feat.reshape(-1, C).astype(jnp.float32)
    wf = w.astype(jnp.bfloat16).astype(jnp.float32)
    y = x @ wf + b.reshape(1, -1)
    mean = jnp.mean(y, axis=0, keepdims=True)
    var = jnp.mean((y - mean) ** 2, axis=0, keepdims=True)      # biased
    z = (y - mean) * lax.rsqrt(var + BN_EPS) * gamma.reshape(1, -1) \
        + beta.reshape(1, -1)
    return jax.nn.sigmoid(z).reshape(N, H, W, -1)


if __name__ == "__main__":
    key = jax.random.PRNGKey(0)
    k_x, k_fw, k_yw, k_yb, k_g, k_b = jax.random.split(key, 6)

    # Small shapes: batch=2, Cin=4, 32x32 input -> features give (2,16,16,512)
    N, Cin, Hin, Win = 2, 4, 32, 32
    Cfeat, Cout = 512, 26

    x = jax.random.normal(k_x, (N, Hin, Win, Cin), jnp.float32)   # NHWC

    params = {
        # features stand-in (HWIO)
        "feat_w": 0.05 * jax.random.normal(k_fw, (3, 3, Cin, Cfeat), jnp.float32),
        "feat_b": jnp.zeros((Cfeat,), jnp.float32),
        # yolo 1x1 conv, stored as (512, 26) matmul weight
        # (== torch Conv2d weight (26, 512, 1, 1) transposed/squeezed)
        "yolo_w": 0.02 * jax.random.normal(k_yw, (Cfeat, Cout), jnp.float32),
        "yolo_b": 0.1 * jax.random.normal(k_yb, (Cout,), jnp.float32),
        # BN params made non-trivial to exercise the fused scale/shift path
        "bn_gamma": 1.0 + 0.1 * jax.random.normal(k_g, (Cout,), jnp.float32),
        "bn_beta": 0.1 * jax.random.normal(k_b, (Cout,), jnp.float32),
    }

    out = jax.block_until_ready(vgg_improve_forward(x, params))
    assert out.shape == (N, Hin // 2, Win // 2, Cout), out.shape
    assert bool(jnp.all(jnp.isfinite(out)))

    # Sanity check against an f32 reference fed the same bf16 features/weights;
    # the tolerance absorbs only the bf16 y handoff between the two passes.
    feat = features_fn(x, params["feat_w"], params["feat_b"])
    ref = yolo_head_ref(feat, params["yolo_w"], params["yolo_b"],
                        params["bn_gamma"], params["bn_beta"])
    assert jnp.allclose(out, ref, atol=2e-2, rtol=0.0), \
        "mismatch vs reference"

    print("KERNEL_OK")
</pallas_src>

<mosaic_0001>
module attributes {stable_mosaic.version = 11 : i64} {
  func.func @conv1x1_stats_kernel(%arg0: i32, %arg1: memref<256x512xbf16, #tpu.memory_space<vmem>>, %arg2: memref<512x128xbf16, #tpu.memory_space<vmem>>, %arg3: memref<256x128xbf16, #tpu.memory_space<vmem>>, %arg4: memref<1x2x128xf32, #tpu.memory_space<vmem>>) attributes {dimension_semantics = [#tpu.dimension_semantics<parallel>], iteration_bounds = array<i64: 2>, scalar_prefetch = 0 : i64, scratch_operands = 0 : i64, tpu.core_type = #tpu.core_type<tc>, window_params = [{transform_indices = @transform_0, window_bounds = array<i64: 256, 512>}, {pipeline_mode = #tpu.pipeline_mode<synchronous>, transform_indices = @transform_1, window_bounds = array<i64: 512, 128>}, {transform_indices = @transform_2, window_bounds = array<i64: 256, 128>}, {transform_indices = @transform_3, window_bounds = array<i64: 1, 2, 128>}]} {
    %c0 = arith.constant 0 : index
    %c0_0 = arith.constant 0 : index
    %0 = vector.load %arg1[%c0, %c0_0] : memref<256x512xbf16, #tpu.memory_space<vmem>>, vector<256x512xbf16>
    %c0_1 = arith.constant 0 : index
    %c0_2 = arith.constant 0 : index
    %1 = vector.load %arg2[%c0_1, %c0_2] : memref<512x128xbf16, #tpu.memory_space<vmem>>, vector<512x128xbf16>
    %cst = arith.constant dense<0.000000e+00> : vector<256x128xf32>
    %2 = tpu.matmul %0, %1, %cst {dimension_numbers = #tpu.dot_dimension_numbers<[1], [0], [0], [1], [0, 0, 1, 1], [], []>} : vector<256x512xbf16>, vector<512x128xbf16>, vector<256x128xf32> -> vector<256x128xf32>
    %3 = arith.truncf %2 : vector<256x128xf32> to vector<256x128xbf16>
    %c0_3 = arith.constant 0 : index
    %c0_4 = arith.constant 0 : index
    %4 = vector.load %arg3[%c0_3, %c0_4] : memref<256x128xbf16, #tpu.memory_space<vmem>>, vector<256x128xbf16>
    tpu.vector_store %arg3[%c0_3, %c0_4], %3 {strides = array<i32>} : memref<256x128xbf16, #tpu.memory_space<vmem>>, vector<256x128xbf16>,
    %cst_5 = arith.constant dense<0.000000e+00> : vector<128xf32>
    %5 = vector.multi_reduction <add>, %2, %cst_5 [0] : vector<256x128xf32> to vector<128xf32>
    %6 = vector.shape_cast %5 : vector<128xf32> to vector<1x128xf32>
    %c0_6 = arith.constant 0 : index
    %c0_7 = arith.constant 0 : index
    %c0_8 = arith.constant 0 : index
    %7 = vector.load %arg4[%c0_6, %c0_7, %c0_8] : memref<1x2x128xf32, #tpu.memory_space<vmem>>, vector<1x1x128xf32>
    %8 = vector.shape_cast %7 : vector<1x1x128xf32> to vector<1x128xf32>
    %9 = vector.shape_cast %6 : vector<1x128xf32> to vector<1x1x128xf32>
    tpu.vector_store %arg4[%c0_6, %c0_7, %c0_8], %9 {strides = array<i32>} : memref<1x2x128xf32, #tpu.memory_space<vmem>>, vector<1x1x128xf32>,
    %10 = arith.mulf %2, %2 : vector<256x128xf32>
    %cst_9 = arith.constant dense<0.000000e+00> : vector<128xf32>
    %11 = vector.multi_reduction <add>, %10, %cst_9 [0] : vector<256x128xf32> to vector<128xf32>
    %12 = vector.shape_cast %11 : vector<128xf32> to vector<1x128xf32>
    %c0_10 = arith.constant 0 : index
    %c1 = arith.constant 1 : index
    %c0_11 = arith.constant 0 : index
    %13 = vector.load %arg4[%c0_10, %c1, %c0_11] : memref<1x2x128xf32, #tpu.memory_space<vmem>>, vector<1x1x128xf32>
    %14 = vector.shape_cast %13 : vector<1x1x128xf32> to vector<1x128xf32>
    %15 = vector.shape_cast %12 : vector<1x128xf32> to vector<1x1x128xf32>
    tpu.vector_store %arg4[%c0_10, %c1, %c0_11], %15 {strides = array<i32>} : memref<1x2x128xf32, #tpu.memory_space<vmem>>, vector<1x1x128xf32>,
    return
  }
  func.func @transform_0(%arg0: i32) -> (i32, i32) {
    %c0_i32 = arith.constant 0 : i32
    %c0_i32_0 = arith.constant 0 : i32
    return %arg0, %c0_i32 : i32, i32
  }
  func.func @transform_1(%arg0: i32) -> (i32, i32) {
    %c0_i32 = arith.constant 0 : i32
    %c0_i32_0 = arith.constant 0 : i32
    %c0_i32_1 = arith.constant 0 : i32
    return %c0_i32, %c0_i32_0 : i32, i32
  }
  func.func @transform_2(%arg0: i32) -> (i32, i32) {
    %c0_i32 = arith.constant 0 : i32
    %c0_i32_0 = arith.constant 0 : i32
    return %arg0, %c0_i32 : i32, i32
  }
  func.func @transform_3(%arg0: i32) -> (i32, i32, i32) {
    %c0_i32 = arith.constant 0 : i32
    %c0_i32_0 = arith.constant 0 : i32
    %c0_i32_1 = arith.constant 0 : i32
    return %arg0, %c0_i32, %c0_i32_0 : i32, i32, i32
  }
}

</mosaic_0001>

<llo_original>
// kernel: tpu_custom_call.1
$region0: #{tpu_custom_call.1}
  #allocation0 [shape = 'u32[]', space=smem, size = 0x4, offset = 0x4, fixed_abs, tag = 'smem constant byte address 0x4 - core index']
  #allocation1 [shape = 'u32[144,128]{1,0:T(1,128)}', space=vmem, size = 0x12000, scoped, tag = 'internal scratch']
  %s0 = inlined_call_operand.hbm [shape: bf16[512,512], index: 0, kind: input, shape index: {}]
  %s1 = inlined_call_operand.hbm [shape: bf16[512,128], index: 1, kind: input, shape index: {}]
  %s2 = inlined_call_operand.hbm [shape: bf16[512,128], index: 2, kind: output, shape index: {0}]
  %s3 = inlined_call_operand.hbm [shape: f32[2,2,128], index: 3, kind: output, shape index: {1}]
  %4 = xla_tuple %s2, %s3
  %s5 = sld [smem:[#allocation0]]
  $region57: #{tpu_custom_call.1} parent=0
    _
  %s7 = ssub.s32 1, %s5
  %s8 = scalar_select 0, %s7, %s5
  $region1: #{tpu_custom_call.1} parent=0
    #allocation2 [shape = 'u8[524288]{0}', space=vmem, size = 0x80000, scoped, tag = 'input window, operand 0']
    #allocation3 [shape = 's32[2]{0}', space=sflag, size = 0x8, scoped, tag = 'scoped memory for tpu_custom_call.1']
    #allocation4 [shape = 's32[2]{0}', space=sflag, size = 0x8, scoped, tag = 'scoped memory for tpu_custom_call.1']
    #allocation5 [shape = 'u8[131072]{0}', space=vmem, size = 0x20000, scoped, tag = 'input window, operand 1, single buffered']
    #allocation6 [shape = 's32[1]{0}', space=sflag, size = 0x4, scoped, tag = 'scoped memory for tpu_custom_call.1']
    #allocation7 [shape = 'u8[131072]{0}', space=vmem, size = 0x20000, scoped, tag = 'output window, operand 0']
    #allocation8 [shape = 'u8[2048]{0}', space=vmem, size = 0x800, scoped, tag = 'output window, operand 1']
    #allocation9 [shape = 's32[2]{0}', space=sflag, size = 0x8, scoped, tag = 'scoped memory for tpu_custom_call.1']
    %9 = vsyncpa [#allocation3], 0
    %s10 = scalar_lea.sflag [#allocation3], 1
    %11 = vsyncpa %s10, 0
    %12 = vsyncpa [#allocation6], 0
    %13 = vsyncpa [#allocation4], 0
    %s14 = scalar_lea.sflag [#allocation4], 1
    %15 = vsyncpa %s14, 0
    %16 = vsyncpa [#allocation9], 0
    %s17 = scalar_lea.sflag [#allocation9], 1
    %18 = vsyncpa %s17, 0
    loop: start=0, step=1, limit=4
    $region2: #{tpu_custom_call.1} parent=1 // loop_pre_header
      _
    $region3: #{tpu_custom_call.1} parent=1 // loop_header
      %s20 = sphi 0, %s24
      %p21 = scmp.ge.s32.totalorder %s20, 4
      %s30 = sphi 0, %s32
      %s33 = sphi 0, %s30
      %s34 = sphi 0, %s33
      %s50 = sphi 0, %s34
      %s54 = sphi 0, %s54
      %s56 = sphi 0, %s54
      %s57 = sphi 0, %s56
      %s71 = sphi 0, %s57
      %s77 = sphi 0, %s79
      %s80 = sphi 0, %s77
      %s81 = sphi 0, %s80
      %s97 = sphi 0, %s81
      %s103 = sphi 0, %s105
      %s106 = sphi 0, %s103
      %s107 = sphi 0, %s106
      %s123 = sphi 0, %s107
    $region4: #{tpu_custom_call.1} parent=1 // loop_header_branch
      %23 = sbr.rel (%p21) target = $region8
    $region5: #{tpu_custom_call.1} parent=1 // loop_body
      %s25 = ssub.s32 %s20, 1
      %s26 = ssub.s32 %s20, 2
      %s27 = sadd.s32 %s20, 1
      %s28 = ssub.s32 %s20, %s27
      %p29 = scmp.eq.s32.totalorder %s28, 0
      %s31 = sadd.s32 %s30, 1
      %s32 = scalar_select %p29, %s30, %s31
      %p35 = pneg %p29
      %p36 = scmp.eq.s32.totalorder %s20, 1
      %p37 = por %p35, %p36
      %p38 = scmp.ne.s32.totalorder %s30, %s33
      %p39 = scmp.eq.s32.totalorder %s20, 0
      %p40 = por %p38, %p39
      %p41 = scmp.ne.s32.totalorder %s30, %s33
      %p42 = scmp.eq.s32.totalorder %s25, 1
      %p43 = por %p41, %p42
      %p44 = scmp.ne.s32.totalorder %s33, %s34
      %p45 = scmp.eq.s32.totalorder %s25, 0
      %p46 = por %p44, %p45
      %p47 = scmp.ne.s32.totalorder %s33, %s34
      %p48 = scmp.eq.s32.totalorder %s26, 1
      %p49 = por %p47, %p48
      %p51 = scmp.ne.s32.totalorder %s34, %s50
      %p52 = scmp.eq.s32.totalorder %s26, 0
      %p53 = por %p51, %p52
      %s55 = sadd.s32 %s54, 1
      %p58 = scmp.eq.s32.totalorder %s20, 1
      %p59 = scmp.ne.s32.totalorder %s54, %s56
      %p60 = scmp.eq.s32.totalorder %s20, 0
      %p61 = por %p59, %p60
      %p62 = scmp.ne.s32.totalorder %s54, %s56
      %p63 = scmp.eq.s32.totalorder %s25, 1
      %p64 = por %p62, %p63
      %p65 = scmp.ne.s32.totalorder %s56, %s57
      %p66 = scmp.eq.s32.totalorder %s25, 0
      %p67 = por %p65, %p66
      %p68 = scmp.ne.s32.totalorder %s56, %s57
      %p69 = scmp.eq.s32.totalorder %s26, 1
      %p70 = por %p68, %p69
      %p72 = scmp.ne.s32.totalorder %s57, %s71
      %p73 = scmp.eq.s32.totalorder %s26, 0
      %p74 = por %p72, %p73
      %s75 = ssub.s32 %s20, %s27
      %p76 = scmp.eq.s32.totalorder %s75, 0
      %s78 = sadd.s32 %s77, 1
      %s79 = scalar_select %p76, %s77, %s78
      %p82 = pneg %p76
      %p83 = scmp.eq.s32.totalorder %s20, 1
      %p84 = por %p82, %p83
      %p85 = scmp.ne.s32.totalorder %s77, %s80
      %p86 = scmp.eq.s32.totalorder %s20, 0
      %p87 = por %p85, %p86
      %p88 = scmp.ne.s32.totalorder %s77, %s80
      %p89 = scmp.eq.s32.totalorder %s25, 1
      %p90 = por %p88, %p89
      %p91 = scmp.ne.s32.totalorder %s80, %s81
      %p92 = scmp.eq.s32.totalorder %s25, 0
      %p93 = por %p91, %p92
      %p94 = scmp.ne.s32.totalorder %s80, %s81
      %p95 = scmp.eq.s32.totalorder %s26, 1
      %p96 = por %p94, %p95
      %p98 = scmp.ne.s32.totalorder %s81, %s97
      %p99 = scmp.eq.s32.totalorder %s26, 0
      %p100 = por %p98, %p99
      %s101 = ssub.s32 %s20, %s27
      %p102 = scmp.eq.s32.totalorder %s101, 0
      %s104 = sadd.s32 %s103, 1
      %s105 = scalar_select %p102, %s103, %s104
      %p108 = pneg %p102
      %p109 = scmp.eq.s32.totalorder %s20, 1
      %p110 = por %p108, %p109
      %p111 = scmp.ne.s32.totalorder %s103, %s106
      %p112 = scmp.eq.s32.totalorder %s20, 0
      %p113 = por %p111, %p112
      %p114 = scmp.ne.s32.totalorder %s103, %s106
      %p115 = scmp.eq.s32.totalorder %s25, 1
      %p116 = por %p114, %p115
      %p117 = scmp.ne.s32.totalorder %s106, %s107
      %p118 = scmp.eq.s32.totalorder %s25, 0
      %p119 = por %p117, %p118
      %p120 = scmp.ne.s32.totalorder %s106, %s107
      %p121 = scmp.eq.s32.totalorder %s26, 1
      %p122 = por %p120, %p121
      %p124 = scmp.ne.s32.totalorder %s107, %s123
      %p125 = scmp.eq.s32.totalorder %s26, 0
      %p126 = por %p124, %p125
      %p127 = scmp.le.s32.totalorder 1, %s20
      %p128 = scmp.lt.s32.totalorder %s20, 3
      %p129 = pnand %p127, %p128
      %p130 = pneg %p129
      // Predicated region
      $region9: #{tpu_custom_call.1} parent=5 // pred_check
        _
      $region10: #{tpu_custom_call.1} parent=5 // pred_check_branch
        %132 = sbr.rel (%p129) target = $region12
      $region11: #{tpu_custom_call.1} parent=5 // pred_region
        %s133 = ssub.s32 %s20, 1
        // Predicated region
        $region13: #{tpu_custom_call.1} parent=11 // pred_check
          %p134 = pneg %p67
        $region14: #{tpu_custom_call.1} parent=11 // pred_check_branch
          %136 = sbr.rel (%p134) target = $region16
        $region15: #{tpu_custom_call.1} parent=11 // pred_region
          %s138 = ssub.s32 4096, 4096
          %139 = vsyncadd [#allocation6], %s138
          %s140 = sshll.u32 [#allocation5], 4
          %s141 = int_to_ptr.vmem [resolvable:$true] %s140
          %146 = dma.hbm_to_vmem [thread:$0]  %s1, 4096, %s141, [#allocation6], 64, 64, 4
        $region16: #{tpu_custom_call.1} parent=11 // pred_fallthru
          _
      $region12: #{tpu_custom_call.1} parent=5 // pred_fallthru
        _
      %p147 = scmp.lt.s32.totalorder %s20, 2
      // Predicated region
      $region17: #{tpu_custom_call.1} parent=5 // pred_check
        %p148 = pneg %p147
      $region18: #{tpu_custom_call.1} parent=5 // pred_check_branch
        %150 = sbr.rel (%p148) target = $region20
      $region19: #{tpu_custom_call.1} parent=5 // pred_region
        // Predicated region
        $region21: #{tpu_custom_call.1} parent=19 // pred_check
          %p151 = pneg %p40
        $region22: #{tpu_custom_call.1} parent=19 // pred_check_branch
          %153 = sbr.rel (%p151) target = $region24
        $region23: #{tpu_custom_call.1} parent=19 // pred_region
          %s154 = sand.u32 %s30, 1
          %s155 = scalar_lea.sflag [#allocation3], %s154
          %s156 = sand.u32 %s30, 1
          %s157 = smul.addr %s156, 512
          %s158 = scalar_lea.vmem [#allocation2], %s157
          %s159 = smul.u32 32, %s20
          %s161 = ssub.s32 8192, 8192
          %162 = vsyncadd %s155, %s161
          %s163 = smul.addr %s159, 4
          %s164 = smul.addr %s163, 64
          %s165 = scalar_lea.hbm %s0, %s164
          %s166 = sshll.u32 %s158, 4
          %s167 = int_to_ptr.vmem [resolvable:$true] %s166
          %172 = dma.hbm_to_vmem [thread:$0]  %s165, 8192, %s167, %s155, 256, 256, 16
        $region24: #{tpu_custom_call.1} parent=19 // pred_fallthru
          _
      $region20: #{tpu_custom_call.1} parent=5 // pred_fallthru
        _
      %p173 = scmp.le.s32.totalorder 1, %s20
      %p174 = scmp.lt.s32.totalorder %s20, 3
      %p175 = pnand %p173, %p174
      %p176 = pneg %p175
      // Predicated region
      $region25: #{tpu_custom_call.1} parent=5 // pred_check
        _
      $region26: #{tpu_custom_call.1} parent=5 // pred_check_branch
        %178 = sbr.rel (%p175) target = $region28
      $region27: #{tpu_custom_call.1} parent=5 // pred_region
        %s179 = ssub.s32 %s20, 1
        %s180 = sand.u32 %s33, 1
        %s181 = scalar_lea.sflag [#allocation3], %s180
        %s182 = sand.u32 %s33, 1
        %s183 = smul.addr %s182, 512
        %s184 = scalar_lea.vmem [#allocation2], %s183
        // Predicated region
        $region29: #{tpu_custom_call.1} parent=27 // pred_check
          %p185 = pneg %p46
        $region30: #{tpu_custom_call.1} parent=27 // pred_check_branch
          %187 = sbr.rel (%p185) target = $region32
        $region31: #{tpu_custom_call.1} parent=27 // pred_region
          %188 = dma.done %s181, 8192
        $region32: #{tpu_custom_call.1} parent=27 // pred_fallthru
          _
        // Predicated region
        $region33: #{tpu_custom_call.1} parent=27 // pred_check
          %p189 = pneg %p67
        $region34: #{tpu_custom_call.1} parent=27 // pred_check_branch
          %191 = sbr.rel (%p189) target = $region36
        $region35: #{tpu_custom_call.1} parent=27 // pred_region
          %192 = dma.done [#allocation6], 4096
        $region36: #{tpu_custom_call.1} parent=27 // pred_fallthru
          _
        %s193 = sand.u32 %s33, 1
        %s194 = scalar_lea.sflag [#allocation3], %s193
        %s195 = sand.u32 %s33, 1
        %s196 = smul.addr %s195, 512
        %s197 = scalar_lea.vmem [#allocation2], %s196
        %p198 = pneg %p46
        %p199 = pneg %p43
        %p200 = pneg %p67
        %p201 = pneg %p64
        %p202 = pneg %p93
        %p203 = pneg %p90
        %s204 = sand.u32 %s80, 1
        %s205 = scalar_lea.sflag [#allocation4], %s204
        %s206 = sand.u32 %s80, 1
        %s207 = smul.addr %s206, 128
        %s208 = scalar_lea.vmem [#allocation7], %s207
        %p209 = pneg %p119
        %p210 = pneg %p116
        %s211 = sand.u32 %s106, 1
        %s212 = scalar_lea.sflag [#allocation9], %s211
        %s213 = sand.u32 %s106, 1
        %s214 = smul.addr %s213, 2
        %s215 = scalar_lea.vmem [#allocation8], %s214
        %s216 = smul.u32 32, %s25
        %s217 = smul.u32 32, %s25
        %v219 = vld [vmem:[%s184] sm:$0xff]
        %v220 = vld [vmem:[%s184 + $0x8] sm:$0xff]
        %v221 = vld [vmem:[%s184 + $0x10] sm:$0xff]
        %v222 = vld [vmem:[%s184 + $0x18] sm:$0xff]
        %v223 = vld [vmem:[%s184 + $0x20] sm:$0xff]
        %v224 = vld [vmem:[%s184 + $0x28] sm:$0xff]
        %v225 = vld [vmem:[%s184 + $0x30] sm:$0xff]
        %v226 = vld [vmem:[%s184 + $0x38] sm:$0xff]
        %v227 = vld [vmem:[%s184 + $0x40] sm:$0xff]
        %v228 = vld [vmem:[%s184 + $0x48] sm:$0xff]
        %v229 = vld [vmem:[%s184 + $0x50] sm:$0xff]
        %v230 = vld [vmem:[%s184 + $0x58] sm:$0xff]
        %v231 = vld [vmem:[%s184 + $0x60] sm:$0xff]
        %v232 = vld [vmem:[%s184 + $0x68] sm:$0xff]
        %v233 = vld [vmem:[%s184 + $0x70] sm:$0xff]
        %v234 = vld [vmem:[%s184 + $0x78] sm:$0xff]
        %v235 = vld [vmem:[%s184 + $0x80] sm:$0xff]
        %v236 = vld [vmem:[%s184 + $0x88] sm:$0xff]
        %v237 = vld [vmem:[%s184 + $0x90] sm:$0xff]
        %v238 = vld [vmem:[%s184 + $0x98] sm:$0xff]
        %v239 = vld [vmem:[%s184 + $0xa0] sm:$0xff]
        %v240 = vld [vmem:[%s184 + $0xa8] sm:$0xff]
        %v241 = vld [vmem:[%s184 + $0xb0] sm:$0xff]
        %v242 = vld [vmem:[%s184 + $0xb8] sm:$0xff]
        %v243 = vld [vmem:[%s184 + $0xc0] sm:$0xff]
        %v244 = vld [vmem:[%s184 + $0xc8] sm:$0xff]
        %v245 = vld [vmem:[%s184 + $0xd0] sm:$0xff]
        %v246 = vld [vmem:[%s184 + $0xd8] sm:$0xff]
        %v247 = vld [vmem:[%s184 + $0xe0] sm:$0xff]
        %v248 = vld [vmem:[%s184 + $0xe8] sm:$0xff]
        %v249 = vld [vmem:[%s184 + $0xf0] sm:$0xff]
        %v250 = vld [vmem:[%s184 + $0xf8] sm:$0xff]
        %v251 = vld [vmem:[%s184 + $0x100] sm:$0xff]
        %v252 = vld [vmem:[%s184 + $0x108] sm:$0xff]
        %v253 = vld [vmem:[%s184 + $0x110] sm:$0xff]
        %v254 = vld [vmem:[%s184 + $0x118] sm:$0xff]
        %v255 = vld [vmem:[%s184 + $0x120] sm:$0xff]
        %v256 = vld [vmem:[%s184 + $0x128] sm:$0xff]
        %v257 = vld [vmem:[%s184 + $0x130] sm:$0xff]
        %v258 = vld [vmem:[%s184 + $0x138] sm:$0xff]
        %v259 = vld [vmem:[%s184 + $0x140] sm:$0xff]
        %v260 = vld [vmem:[%s184 + $0x148] sm:$0xff]
        %v261 = vld [vmem:[%s184 + $0x150] sm:$0xff]
        %v262 = vld [vmem:[%s184 + $0x158] sm:$0xff]
        %v263 = vld [vmem:[%s184 + $0x160] sm:$0xff]
        %v264 = vld [vmem:[%s184 + $0x168] sm:$0xff]
        %v265 = vld [vmem:[%s184 + $0x170] sm:$0xff]
        %v266 = vld [vmem:[%s184 + $0x178] sm:$0xff]
        %v267 = vld [vmem:[%s184 + $0x180] sm:$0xff]
        %v268 = vld [vmem:[%s184 + $0x188] sm:$0xff]
        %v269 = vld [vmem:[%s184 + $0x190] sm:$0xff]
        %v270 = vld [vmem:[%s184 + $0x198] sm:$0xff]
        %v271 = vld [vmem:[%s184 + $0x1a0] sm:$0xff]
        %v272 = vld [vmem:[%s184 + $0x1a8] sm:$0xff]
        %v273 = vld [vmem:[%s184 + $0x1b0] sm:$0xff]
        %v274 = vld [vmem:[%s184 + $0x1b8] sm:$0xff]
        %v275 = vld [vmem:[%s184 + $0x1c0] sm:$0xff]
        %v276 = vld [vmem:[%s184 + $0x1c8] sm:$0xff]
        %v277 = vld [vmem:[%s184 + $0x1d0] sm:$0xff]
        %v278 = vld [vmem:[%s184 + $0x1d8] sm:$0xff]
        %v279 = vld [vmem:[%s184 + $0x1e0] sm:$0xff]
        %v280 = vld [vmem:[%s184 + $0x1e8] sm:$0xff]
        %v281 = vld [vmem:[%s184 + $0x1f0] sm:$0xff]
        %v282 = vld [vmem:[%s184 + $0x1f8] sm:$0xff]
        %v283 = vld [vmem:[#allocation5] sm:$0xf]
        %v284 = vld [vmem:[#allocation5 + $0x4] sm:$0xf]
        %v285 = vld [vmem:[#allocation5 + $0x8] sm:$0xf]
        %v286 = vld [vmem:[#allocation5 + $0xc] sm:$0xf]
        %v287 = vld [vmem:[#allocation5 + $0x10] sm:$0xf]
        %v288 = vld [vmem:[#allocation5 + $0x14] sm:$0xf]
        %v289 = vld [vmem:[#allocation5 + $0x18] sm:$0xf]
        %v290 = vld [vmem:[#allocation5 + $0x1c] sm:$0xf]
        %v291 = vld [vmem:[#allocation5 + $0x20] sm:$0xf]
        %v292 = vld [vmem:[#allocation5 + $0x24] sm:$0xf]
        %v293 = vld [vmem:[#allocation5 + $0x28] sm:$0xf]
        %v294 = vld [vmem:[#allocation5 + $0x2c] sm:$0xf]
        %v295 = vld [vmem:[#allocation5 + $0x30] sm:$0xf]
        %v296 = vld [vmem:[#allocation5 + $0x34] sm:$0xf]
        %v297 = vld [vmem:[#allocation5 + $0x38] sm:$0xf]
        %v298 = vld [vmem:[#allocation5 + $0x3c] sm:$0xf]
        %v299 = vld [vmem:[#allocation5 + $0x40] sm:$0xf]
        %v300 = vld [vmem:[#allocation5 + $0x44] sm:$0xf]
        %v301 = vld [vmem:[#allocation5 + $0x48] sm:$0xf]
        %v302 = vld [vmem:[#allocation5 + $0x4c] sm:$0xf]
        %v303 = vld [vmem:[#allocation5 + $0x50] sm:$0xf]
        %v304 = vld [vmem:[#allocation5 + $0x54] sm:$0xf]
        %v305 = vld [vmem:[#allocation5 + $0x58] sm:$0xf]
        %v306 = vld [vmem:[#allocation5 + $0x5c] sm:$0xf]
        %v307 = vld [vmem:[#allocation5 + $0x60] sm:$0xf]
        %v308 = vld [vmem:[#allocation5 + $0x64] sm:$0xf]
        %v309 = vld [vmem:[#allocation5 + $0x68] sm:$0xf]
        %v310 = vld [vmem:[#allocation5 + $0x6c] sm:$0xf]
        %v311 = vld [vmem:[#allocation5 + $0x70] sm:$0xf]
        %v312 = vld [vmem:[#allocation5 + $0x74] sm:$0xf]
        %v313 = vld [vmem:[#allocation5 + $0x78] sm:$0xf]
        %v314 = vld [vmem:[#allocation5 + $0x7c] sm:$0xf]
        %v315 = vld [vmem:[#allocation5 + $0x80] sm:$0xf]
        %v316 = vld [vmem:[#allocation5 + $0x84] sm:$0xf]
        %v317 = vld [vmem:[#allocation5 + $0x88] sm:$0xf]
        %v318 = vld [vmem:[#allocation5 + $0x8c] sm:$0xf]
        %v319 = vld [vmem:[#allocation5 + $0x90] sm:$0xf]
        %v320 = vld [vmem:[#allocation5 + $0x94] sm:$0xf]
        %v321 = vld [vmem:[#allocation5 + $0x98] sm:$0xf]
        %v322 = vld [vmem:[#allocation5 + $0x9c] sm:$0xf]
        %v323 = vld [vmem:[#allocation5 + $0xa0] sm:$0xf]
        %v324 = vld [vmem:[#allocation5 + $0xa4] sm:$0xf]
        %v325 = vld [vmem:[#allocation5 + $0xa8] sm:$0xf]
        %v326 = vld [vmem:[#allocation5 + $0xac] sm:$0xf]
        %v327 = vld [vmem:[#allocation5 + $0xb0] sm:$0xf]
        %v328 = vld [vmem:[#allocation5 + $0xb4] sm:$0xf]
        %v329 = vld [vmem:[#allocation5 + $0xb8] sm:$0xf]
        %v330 = vld [vmem:[#allocation5 + $0xbc] sm:$0xf]
        %v331 = vld [vmem:[#allocation5 + $0xc0] sm:$0xf]
        %v332 = vld [vmem:[#allocation5 + $0xc4] sm:$0xf]
        %v333 = vld [vmem:[#allocation5 + $0xc8] sm:$0xf]
        %v334 = vld [vmem:[#allocation5 + $0xcc] sm:$0xf]
        %v335 = vld [vmem:[#allocation5 + $0xd0] sm:$0xf]
        %v336 = vld [vmem:[#allocation5 + $0xd4] sm:$0xf]
        %v337 = vld [vmem:[#allocation5 + $0xd8] sm:$0xf]
        %v338 = vld [vmem:[#allocation5 + $0xdc] sm:$0xf]
        %v339 = vld [vmem:[#allocation5 + $0xe0] sm:$0xf]
        %v340 = vld [vmem:[#allocation5 + $0xe4] sm:$0xf]
        %v341 = vld [vmem:[#allocation5 + $0xe8] sm:$0xf]
        %v342 = vld [vmem:[#allocation5 + $0xec] sm:$0xf]
        %v343 = vld [vmem:[#allocation5 + $0xf0] sm:$0xf]
        %v344 = vld [vmem:[#allocation5 + $0xf4] sm:$0xf]
        %v345 = vld [vmem:[#allocation5 + $0xf8] sm:$0xf]
        %v346 = vld [vmem:[#allocation5 + $0xfc] sm:$0xf]
        %v411 = vunpack.c.l.b16 %v219
        %v412 = vunpack.c.h.b16 %v219
        %v413 = vunpack.c.l.b16 %v220
        %v414 = vunpack.c.h.b16 %v220
        %v415 = vunpack.c.l.b16 %v221
        %v416 = vunpack.c.h.b16 %v221
        %v417 = vunpack.c.l.b16 %v222
        %v418 = vunpack.c.h.b16 %v222
        %v419 = vunpack.c.l.b16 %v223
        %v420 = vunpack.c.h.b16 %v223
        %v421 = vunpack.c.l.b16 %v224
        %v422 = vunpack.c.h.b16 %v224
        %v423 = vunpack.c.l.b16 %v225
        %v424 = vunpack.c.h.b16 %v225
        %v425 = vunpack.c.l.b16 %v226
        %v426 = vunpack.c.h.b16 %v226
        %v427 = vunpack.c.l.b16 %v227
        %v428 = vunpack.c.h.b16 %v227
        %v429 = vunpack.c.l.b16 %v228
        %v430 = vunpack.c.h.b16 %v228
        %v431 = vunpack.c.l.b16 %v229
        %v432 = vunpack.c.h.b16 %v229
        %v433 = vunpack.c.l.b16 %v230
        %v434 = vunpack.c.h.b16 %v230
        %v435 = vunpack.c.l.b16 %v231
        %v436 = vunpack.c.h.b16 %v231
        %v437 = vunpack.c.l.b16 %v232
        %v438 = vunpack.c.h.b16 %v232
        %v439 = vunpack.c.l.b16 %v233
        %v440 = vunpack.c.h.b16 %v233
        %v441 = vunpack.c.l.b16 %v234
        %v442 = vunpack.c.h.b16 %v234
        %v443 = vunpack.c.l.b16 %v235
        %v444 = vunpack.c.h.b16 %v235
        %v445 = vunpack.c.l.b16 %v236
        %v446 = vunpack.c.h.b16 %v236
        %v447 = vunpack.c.l.b16 %v237
        %v448 = vunpack.c.h.b16 %v237
        %v449 = vunpack.c.l.b16 %v238
        %v450 = vunpack.c.h.b16 %v238
        %v451 = vunpack.c.l.b16 %v239
        %v452 = vunpack.c.h.b16 %v239
        %v453 = vunpack.c.l.b16 %v240
        %v454 = vunpack.c.h.b16 %v240
        %v455 = vunpack.c.l.b16 %v241
        %v456 = vunpack.c.h.b16 %v241
        %v457 = vunpack.c.l.b16 %v242
        %v458 = vunpack.c.h.b16 %v242
        %v459 = vunpack.c.l.b16 %v243
        %v460 = vunpack.c.h.b16 %v243
        %v461 = vunpack.c.l.b16 %v244
        %v462 = vunpack.c.h.b16 %v244
        %v463 = vunpack.c.l.b16 %v245
        %v464 = vunpack.c.h.b16 %v245
        %v465 = vunpack.c.l.b16 %v246
        %v466 = vunpack.c.h.b16 %v246
        %v467 = vunpack.c.l.b16 %v247
        %v468 = vunpack.c.h.b16 %v247
        %v469 = vunpack.c.l.b16 %v248
        %v470 = vunpack.c.h.b16 %v248
        %v471 = vunpack.c.l.b16 %v249
        %v472 = vunpack.c.h.b16 %v249
        %v473 = vunpack.c.l.b16 %v250
        %v474 = vunpack.c.h.b16 %v250
        %v475 = vunpack.c.l.b16 %v251
        %v476 = vunpack.c.h.b16 %v251
        %v477 = vunpack.c.l.b16 %v252
        %v478 = vunpack.c.h.b16 %v252
        %v479 = vunpack.c.l.b16 %v253
        %v480 = vunpack.c.h.b16 %v253
        %v481 = vunpack.c.l.b16 %v254
        %v482 = vunpack.c.h.b16 %v254
        %v483 = vunpack.c.l.b16 %v255
        %v484 = vunpack.c.h.b16 %v255
        %v485 = vunpack.c.l.b16 %v256
        %v486 = vunpack.c.h.b16 %v256
        %v487 = vunpack.c.l.b16 %v257
        %v488 = vunpack.c.h.b16 %v257
        %v489 = vunpack.c.l.b16 %v258
        %v490 = vunpack.c.h.b16 %v258
        %v491 = vunpack.c.l.b16 %v259
        %v492 = vunpack.c.h.b16 %v259
        %v493 = vunpack.c.l.b16 %v260
        %v494 = vunpack.c.h.b16 %v260
        %v495 = vunpack.c.l.b16 %v261
        %v496 = vunpack.c.h.b16 %v261
        %v497 = vunpack.c.l.b16 %v262
        %v498 = vunpack.c.h.b16 %v262
        %v499 = vunpack.c.l.b16 %v263
        %v500 = vunpack.c.h.b16 %v263
        %v501 = vunpack.c.l.b16 %v264
        %v502 = vunpack.c.h.b16 %v264
        %v503 = vunpack.c.l.b16 %v265
        %v504 = vunpack.c.h.b16 %v265
        %v505 = vunpack.c.l.b16 %v266
        %v506 = vunpack.c.h.b16 %v266
        %v507 = vunpack.c.l.b16 %v267
        %v508 = vunpack.c.h.b16 %v267
        %v509 = vunpack.c.l.b16 %v268
        %v510 = vunpack.c.h.b16 %v268
        %v511 = vunpack.c.l.b16 %v269
        %v512 = vunpack.c.h.b16 %v269
        %v513 = vunpack.c.l.b16 %v270
        %v514 = vunpack.c.h.b16 %v270
        %v515 = vunpack.c.l.b16 %v271
        %v516 = vunpack.c.h.b16 %v271
        %v517 = vunpack.c.l.b16 %v272
        %v518 = vunpack.c.h.b16 %v272
        %v519 = vunpack.c.l.b16 %v273
        %v520 = vunpack.c.h.b16 %v273
        %v521 = vunpack.c.l.b16 %v274
        %v522 = vunpack.c.h.b16 %v274
        %v523 = vunpack.c.l.b16 %v275
        %v524 = vunpack.c.h.b16 %v275
        %v525 = vunpack.c.l.b16 %v276
        %v526 = vunpack.c.h.b16 %v276
        %v527 = vunpack.c.l.b16 %v277
        %v528 = vunpack.c.h.b16 %v277
        %v529 = vunpack.c.l.b16 %v278
        %v530 = vunpack.c.h.b16 %v278
        %v531 = vunpack.c.l.b16 %v279
        %v532 = vunpack.c.h.b16 %v279
        %v533 = vunpack.c.l.b16 %v280
        %v534 = vunpack.c.h.b16 %v280
        %v535 = vunpack.c.l.b16 %v281
        %v536 = vunpack.c.h.b16 %v281
        %v537 = vunpack.c.l.b16 %v282
        %v538 = vunpack.c.h.b16 %v282
        %v539 = vpack.c.b16 %v415, %v411
        %v540 = vpack.c.b16 %v416, %v412
        %v541 = vpack.c.b16 %v417, %v413
        %v542 = vpack.c.b16 %v418, %v414
        %v543 = vpack.c.b16 %v423, %v419
        %v544 = vpack.c.b16 %v424, %v420
        %v545 = vpack.c.b16 %v425, %v421
        %v546 = vpack.c.b16 %v426, %v422
        %v547 = vpack.c.b16 %v431, %v427
        %v548 = vpack.c.b16 %v432, %v428
        %v549 = vpack.c.b16 %v433, %v429
        %v550 = vpack.c.b16 %v434, %v430
        %v551 = vpack.c.b16 %v439, %v435
        %v552 = vpack.c.b16 %v440, %v436
        %v553 = vpack.c.b16 %v441, %v437
        %v554 = vpack.c.b16 %v442, %v438
        %v555 = vpack.c.b16 %v447, %v443
        %v556 = vpack.c.b16 %v448, %v444
        %v557 = vpack.c.b16 %v449, %v445
        %v558 = vpack.c.b16 %v450, %v446
        %v559 = vpack.c.b16 %v455, %v451
        %v560 = vpack.c.b16 %v456, %v452
        %v561 = vpack.c.b16 %v457, %v453
        %v562 = vpack.c.b16 %v458, %v454
        %v563 = vpack.c.b16 %v463, %v459
        %v564 = vpack.c.b16 %v464, %v460
        %v565 = vpack.c.b16 %v465, %v461
        %v566 = vpack.c.b16 %v466, %v462
        %v567 = vpack.c.b16 %v471, %v467
        %v568 = vpack.c.b16 %v472, %v468
        %v569 = vpack.c.b16 %v473, %v469
        %v570 = vpack.c.b16 %v474, %v470
        %v571 = vpack.c.b16 %v479, %v475
        %v572 = vpack.c.b16 %v480, %v476
        %v573 = vpack.c.b16 %v481, %v477
        %v574 = vpack.c.b16 %v482, %v478
        %v575 = vpack.c.b16 %v487, %v483
        %v576 = vpack.c.b16 %v488, %v484
        %v577 = vpack.c.b16 %v489, %v485
        %v578 = vpack.c.b16 %v490, %v486
        %v579 = vpack.c.b16 %v495, %v491
        %v580 = vpack.c.b16 %v496, %v492
        %v581 = vpack.c.b16 %v497, %v493
        %v582 = vpack.c.b16 %v498, %v494
        %v583 = vpack.c.b16 %v503, %v499
        %v584 = vpack.c.b16 %v504, %v500
        %v585 = vpack.c.b16 %v505, %v501
        %v586 = vpack.c.b16 %v506, %v502
        %v587 = vpack.c.b16 %v511, %v507
        %v588 = vpack.c.b16 %v512, %v508
        %v589 = vpack.c.b16 %v513, %v509
        %v590 = vpack.c.b16 %v514, %v510
        %v591 = vpack.c.b16 %v519, %v515
        %v592 = vpack.c.b16 %v520, %v516
        %v593 = vpack.c.b16 %v521, %v517
        %v594 = vpack.c.b16 %v522, %v518
        %v595 = vpack.c.b16 %v527, %v523
        %v596 = vpack.c.b16 %v528, %v524
        %v597 = vpack.c.b16 %v529, %v525
        %v598 = vpack.c.b16 %v530, %v526
        %v599 = vpack.c.b16 %v535, %v531
        %v600 = vpack.c.b16 %v536, %v532
        %v601 = vpack.c.b16 %v537, %v533
        %v602 = vpack.c.b16 %v538, %v534
        %v731 = vunpack.c.l.b16 %v283
        %v732 = vunpack.c.l.b16 %v284
        %v733 = vunpack.c.l.b16 %v285
        %v734 = vunpack.c.l.b16 %v286
        %v735 = vunpack.c.l.b16 %v287
        %v736 = vunpack.c.l.b16 %v288
        %v737 = vunpack.c.l.b16 %v289
        %v738 = vunpack.c.l.b16 %v290
        %v739 = vunpack.c.l.b16 %v291
        %v740 = vunpack.c.l.b16 %v292
        %v741 = vunpack.c.l.b16 %v293
        %v742 = vunpack.c.l.b16 %v294
        %v743 = vunpack.c.l.b16 %v295
        %v744 = vunpack.c.l.b16 %v296
        %v745 = vunpack.c.l.b16 %v297
        %v746 = vunpack.c.l.b16 %v298
        %v747 = vunpack.c.l.b16 %v299
        %v748 = vunpack.c.l.b16 %v300
        %v749 = vunpack.c.l.b16 %v301
        %v750 = vunpack.c.l.b16 %v302
        %v751 = vunpack.c.l.b16 %v303
        %v752 = vunpack.c.l.b16 %v304
        %v753 = vunpack.c.l.b16 %v305
        %v754 = vunpack.c.l.b16 %v306
        %v755 = vunpack.c.l.b16 %v307
        %v756 = vunpack.c.l.b16 %v308
        %v757 = vunpack.c.l.b16 %v309
        %v758 = vunpack.c.l.b16 %v310
        %v759 = vunpack.c.l.b16 %v311
        %v760 = vunpack.c.l.b16 %v312
        %v761 = vunpack.c.l.b16 %v313
        %v762 = vunpack.c.l.b16 %v314
        %v763 = vunpack.c.l.b16 %v315
        %v764 = vunpack.c.l.b16 %v316
        %v765 = vunpack.c.l.b16 %v317
        %v766 = vunpack.c.l.b16 %v318
        %v767 = vunpack.c.l.b16 %v319
        %v768 = vunpack.c.l.b16 %v320
        %v769 = vunpack.c.l.b16 %v321
        %v770 = vunpack.c.l.b16 %v322
        %v771 = vunpack.c.l.b16 %v323
        %v772 = vunpack.c.l.b16 %v324
        %v773 = vunpack.c.l.b16 %v325
        %v774 = vunpack.c.l.b16 %v326
        %v775 = vunpack.c.l.b16 %v327
        %v776 = vunpack.c.l.b16 %v328
        %v777 = vunpack.c.l.b16 %v329
        %v778 = vunpack.c.l.b16 %v330
        %v779 = vunpack.c.l.b16 %v331
        %v780 = vunpack.c.l.b16 %v332
        %v781 = vunpack.c.l.b16 %v333
        %v782 = vunpack.c.l.b16 %v334
        %v783 = vunpack.c.l.b16 %v335
        %v784 = vunpack.c.l.b16 %v336
        %v785 = vunpack.c.l.b16 %v337
        %v786 = vunpack.c.l.b16 %v338
        %v787 = vunpack.c.l.b16 %v339
        %v788 = vunpack.c.l.b16 %v340
        %v789 = vunpack.c.l.b16 %v341
        %v790 = vunpack.c.l.b16 %v342
        %v791 = vunpack.c.l.b16 %v343
        %v792 = vunpack.c.l.b16 %v344
        %v793 = vunpack.c.l.b16 %v345
        %v794 = vunpack.c.l.b16 %v346
        %v795 = vpack.c.b16 %v732, %v731
        %v796 = vpack.c.b16 %v734, %v733
        %v797 = vpack.c.b16 %v736, %v735
        %v798 = vpack.c.b16 %v738, %v737
        %v799 = vpack.c.b16 %v740, %v739
        %v800 = vpack.c.b16 %v742, %v741
        %v801 = vpack.c.b16 %v744, %v743
        %v802 = vpack.c.b16 %v746, %v745
        %v803 = vpack.c.b16 %v748, %v747
        %v804 = vpack.c.b16 %v750, %v749
        %v805 = vpack.c.b16 %v752, %v751
        %v806 = vpack.c.b16 %v754, %v753
        %v807 = vpack.c.b16 %v756, %v755
        %v808 = vpack.c.b16 %v758, %v757
        %v809 = vpack.c.b16 %v760, %v759
        %v810 = vpack.c.b16 %v762, %v761
        %v811 = vpack.c.b16 %v764, %v763
        %v812 = vpack.c.b16 %v766, %v765
        %v813 = vpack.c.b16 %v768, %v767
        %v814 = vpack.c.b16 %v770, %v769
        %v815 = vpack.c.b16 %v772, %v771
        %v816 = vpack.c.b16 %v774, %v773
        %v817 = vpack.c.b16 %v776, %v775
        %v818 = vpack.c.b16 %v778, %v777
        %v819 = vpack.c.b16 %v780, %v779
        %v820 = vpack.c.b16 %v782, %v781
        %v821 = vpack.c.b16 %v784, %v783
        %v822 = vpack.c.b16 %v786, %v785
        %v823 = vpack.c.b16 %v788, %v787
        %v824 = vpack.c.b16 %v790, %v789
        %v825 = vpack.c.b16 %v792, %v791
        %v826 = vpack.c.b16 %v794, %v793
        %859 = vmatprep.subr.bf16.mxu0 0
        %860 = vmatpush1.bf16.msra.mxu0 %v795
        %861 = vmatprep.subr.bf16.mxu0 0
        %862 = vmatpush1.bf16.msra.mxu0 %v796
        %863 = vmatprep.subr.bf16.mxu0 0
        %864 = vmatpush1.bf16.msra.mxu0 %v797
        %865 = vmatprep.subr.bf16.mxu0 0
        %866 = vmatpush1.bf16.msra.mxu0 %v798
        %867 = vmatprep.subr.bf16.mxu0 0
        %868 = vmatpush1.bf16.msra.mxu0 %v799
        %869 = vmatprep.subr.bf16.mxu0 0
        %870 = vmatpush1.bf16.msra.mxu0 %v800
        %871 = vmatprep.subr.bf16.mxu0 0
        %872 = vmatpush1.bf16.msra.mxu0 %v801
        %873 = vmatprep.subr.bf16.mxu0 0
        %874 = vmatpush1.bf16.msra.mxu0 %v802
        %875 = vmatprep.subr.bf16.mxu0 0
        %876 = vmatpush1.bf16.msra.mxu0 %v803
        %877 = vmatprep.subr.bf16.mxu0 0
        %878 = vmatpush1.bf16.msra.mxu0 %v804
        %879 = vmatprep.subr.bf16.mxu0 0
        %880 = vmatpush1.bf16.msra.mxu0 %v805
        %881 = vmatprep.subr.bf16.mxu0 0
        %882 = vmatpush1.bf16.msra.mxu0 %v806
        %883 = vmatprep.subr.bf16.mxu0 0
        %884 = vmatpush1.bf16.msra.mxu0 %v807
        %885 = vmatprep.subr.bf16.mxu0 0
        %886 = vmatpush1.bf16.msra.mxu0 %v808
        %887 = vmatprep.subr.bf16.mxu0 0
        %888 = vmatpush1.bf16.msra.mxu0 %v809
        %889 = vmatprep.subr.bf16.mxu0 0
        %890 = vmatpush1.bf16.msra.mxu0 %v810
        %891 = vmatprep.mubr.bf16.mxu0 %v540
        %892 = vmatmul.mubr.bf16.gmra.mrb[0].mxu0 %v539
        %v893 = vpop.f32.mrb[0].mxu0
        %v894 = vadd.f32 0.0, %v893
        %v895 = vpop.f32.mrb[0].mxu0
        %v896 = vpop.f32.mrb[0].mxu0
        %v897 = vadd.f32 0.0, %v896
        %v898 = vpop.f32.mrb[0].mxu0
        %899 = vmatprep.mubr.bf16.mxu0 %v544
        %900 = vmatmul.mubr.bf16.gmra.mrb[0].mxu0 %v543
        %v901 = vpop.f32.mrb[0].mxu0
        %v902 = vadd.f32 0.0, %v901
        %v903 = vpop.f32.mrb[0].mxu0
        %v904 = vpop.f32.mrb[0].mxu0
        %v905 = vadd.f32 0.0, %v904
        %v906 = vpop.f32.mrb[0].mxu0
        %907 = vmatprep.mubr.bf16.mxu0 %v548
        %908 = vmatmul.mubr.bf16.gmra.mrb[0].mxu0 %v547
        %v909 = vpop.f32.mrb[0].mxu0
        %v910 = vadd.f32 0.0, %v909
        %v911 = vpop.f32.mrb[0].mxu0
        %v912 = vpop.f32.mrb[0].mxu0
        %v913 = vadd.f32 0.0, %v912
        %v914 = vpop.f32.mrb[0].mxu0
        %915 = vmatprep.mubr.bf16.mxu0 %v552
        %916 = vmatmul.mubr.bf16.gmra.mrb[0].mxu0 %v551
        %v917 = vpop.f32.mrb[0].mxu0
        %v918 = vadd.f32 0.0, %v917
        %v919 = vpop.f32.mrb[0].mxu0
        %v920 = vpop.f32.mrb[0].mxu0
        %v921 = vadd.f32 0.0, %v920
        %v922 = vpop.f32.mrb[0].mxu0
        %923 = vmatprep.mubr.bf16.mxu0 %v556
        %924 = vmatmul.mubr.bf16.gmra.mrb[0].mxu0 %v555
        %v925 = vpop.f32.mrb[0].mxu0
        %v926 = vadd.f32 0.0, %v925
        %v927 = vpop.f32.mrb[0].mxu0
        %v928 = vpop.f32.mrb[0].mxu0
        %v929 = vadd.f32 0.0, %v928
        %v930 = vpop.f32.mrb[0].mxu0
        %931 = vmatprep.mubr.bf16.mxu0 %v560
        %932 = vmatmul.mubr.bf16.gmra.mrb[0].mxu0 %v559
        %v933 = vpop.f32.mrb[0].mxu0
        %v934 = vadd.f32 0.0, %v933
        %v935 = vpop.f32.mrb[0].mxu0
        %v936 = vpop.f32.mrb[0].mxu0
        %v937 = vadd.f32 0.0, %v936
        %v938 = vpop.f32.mrb[0].mxu0
        %939 = vmatprep.mubr.bf16.mxu0 %v564
        %940 = vmatmul.mubr.bf16.gmra.mrb[0].mxu0 %v563
        %v941 = vpop.f32.mrb[0].mxu0
        %v942 = vadd.f32 0.0, %v941
        %v943 = vpop.f32.mrb[0].mxu0
        %v944 = vpop.f32.mrb[0].mxu0
        %v945 = vadd.f32 0.0, %v944
        %v946 = vpop.f32.mrb[0].mxu0
        %947 = vmatprep.mubr.bf16.mxu0 %v568
        %948 = vmatmul.mubr.bf16.gmra.mrb[0].mxu0 %v567
        %v949 = vpop.f32.mrb[0].mxu0
        %v950 = vadd.f32 0.0, %v949
        %v951 = vpop.f32.mrb[0].mxu0
        %v952 = vpop.f32.mrb[0].mxu0
        %v953 = vadd.f32 0.0, %v952
        %v954 = vpop.f32.mrb[0].mxu0
        %955 = vmatprep.mubr.bf16.mxu0 %v572
        %956 = vmatmul.mubr.bf16.gmra.mrb[0].mxu0 %v571
        %v957 = vpop.f32.mrb[0].mxu0
        %v958 = vadd.f32 0.0, %v957
        %v959 = vpop.f32.mrb[0].mxu0
        %v960 = vpop.f32.mrb[0].mxu0
        %v961 = vadd.f32 0.0, %v960
        %v962 = vpop.f32.mrb[0].mxu0
        %963 = vmatprep.mubr.bf16.mxu0 %v576
        %964 = vmatmul.mubr.bf16.gmra.mrb[0].mxu0 %v575
        %v965 = vpop.f32.mrb[0].mxu0
        %v966 = vadd.f32 0.0, %v965
        %v967 = vpop.f32.mrb[0].mxu0
        %v968 = vpop.f32.mrb[0].mxu0
        %v969 = vadd.f32 0.0, %v968
        %v970 = vpop.f32.mrb[0].mxu0
        %971 = vmatprep.mubr.bf16.mxu0 %v580
        %972 = vmatmul.mubr.bf16.gmra.mrb[0].mxu0 %v579
        %v973 = vpop.f32.mrb[0].mxu0
        %v974 = vadd.f32 0.0, %v973
        %v975 = vpop.f32.mrb[0].mxu0
        %v976 = vpop.f32.mrb[0].mxu0
        %v977 = vadd.f32 0.0, %v976
        %v978 = vpop.f32.mrb[0].mxu0
        %979 = vmatprep.mubr.bf16.mxu0 %v584
        %980 = vmatmul.mubr.bf16.gmra.mrb[0].mxu0 %v583
        %v981 = vpop.f32.mrb[0].mxu0
        %v982 = vadd.f32 0.0, %v981
        %v983 = vpop.f32.mrb[0].mxu0
        %v984 = vpop.f32.mrb[0].mxu0
        %v985 = vadd.f32 0.0, %v984
        %v986 = vpop.f32.mrb[0].mxu0
        %987 = vmatprep.mubr.bf16.mxu0 %v588
        %988 = vmatmul.mubr.bf16.gmra.mrb[0].mxu0 %v587
        %v989 = vpop.f32.mrb[0].mxu0
        %v990 = vadd.f32 0.0, %v989
        %v991 = vpop.f32.mrb[0].mxu0
        %v992 = vpop.f32.mrb[0].mxu0
        %v993 = vadd.f32 0.0, %v992
        %v994 = vpop.f32.mrb[0].mxu0
        %995 = vmatprep.mubr.bf16.mxu0 %v592
        %996 = vmatmul.mubr.bf16.gmra.mrb[0].mxu0 %v591
        %v997 = vpop.f32.mrb[0].mxu0
        %v998 = vadd.f32 0.0, %v997
        %v999 = vpop.f32.mrb[0].mxu0
        %v1000 = vpop.f32.mrb[0].mxu0
        %v1001 = vadd.f32 0.0, %v1000
        %v1002 = vpop.f32.mrb[0].mxu0
        %1003 = vmatprep.mubr.bf16.mxu0 %v596
        %1004 = vmatmul.mubr.bf16.gmra.mrb[0].mxu0 %v595
        %v1005 = vpop.f32.mrb[0].mxu0
        %v1006 = vadd.f32 0.0, %v1005
        %v1007 = vpop.f32.mrb[0].mxu0
        %v1008 = vpop.f32.mrb[0].mxu0
        %v1009 = vadd.f32 0.0, %v1008
        %v1010 = vpop.f32.mrb[0].mxu0
        %1011 = vmatprep.mubr.bf16.mxu0 %v600
        %1012 = vmatmul.mubr.bf16.gmra.mrb[0].mxu0 %v599
        %v1013 = vpop.f32.mrb[0].mxu0
        %v1014 = vadd.f32 0.0, %v1013
        %v1015 = vpop.f32.mrb[0].mxu0
        %v1016 = vpop.f32.mrb[0].mxu0
        %v1017 = vadd.f32 0.0, %v1016
        %v1018 = vpop.f32.mrb[0].mxu0
        %1019 = vdwg.mxu0
        %1020 = vmatprep.subr.bf16.mxu0 0
        %1021 = vmatpush1.bf16.msra.mxu0 %v811
        %1022 = vmatprep.subr.bf16.mxu0 0
        %1023 = vmatpush1.bf16.msra.mxu0 %v812
        %1024 = vmatprep.subr.bf16.mxu0 0
        %1025 = vmatpush1.bf16.msra.mxu0 %v813
        %1026 = vmatprep.subr.bf16.mxu0 0
        %1027 = vmatpush1.bf16.msra.mxu0 %v814
        %1028 = vmatprep.subr.bf16.mxu0 0
        %1029 = vmatpush1.bf16.msra.mxu0 %v815
        %1030 = vmatprep.subr.bf16.mxu0 0
        %1031 = vmatpush1.bf16.msra.mxu0 %v816
        %1032 = vmatprep.subr.bf16.mxu0 0
        %1033 = vmatpush1.bf16.msra.mxu0 %v817
        %1034 = vmatprep.subr.bf16.mxu0 0
        %1035 = vmatpush1.bf16.msra.mxu0 %v818
        %1036 = vmatprep.subr.bf16.mxu0 0
        %1037 = vmatpush1.bf16.msra.mxu0 %v819
        %1038 = vmatprep.subr.bf16.mxu0 0
        %1039 = vmatpush1.bf16.msra.mxu0 %v820
        %1040 = vmatprep.subr.bf16.mxu0 0
        %1041 = vmatpush1.bf16.msra.mxu0 %v821
        %1042 = vmatprep.subr.bf16.mxu0 0
        %1043 = vmatpush1.bf16.msra.mxu0 %v822
        %1044 = vmatprep.subr.bf16.mxu0 0
        %1045 = vmatpush1.bf16.msra.mxu0 %v823
        %1046 = vmatprep.subr.bf16.mxu0 0
        %1047 = vmatpush1.bf16.msra.mxu0 %v824
        %1048 = vmatprep.subr.bf16.mxu0 0
        %1049 = vmatpush1.bf16.msra.mxu0 %v825
        %1050 = vmatprep.subr.bf16.mxu0 0
        %1051 = vmatpush1.bf16.msra.mxu0 %v826
        %1052 = vmatprep.mubr.bf16.mxu0 %v542
        %1053 = vmatmul.mubr.bf16.gmra.mrb[0].mxu0 %v541
        %v1054 = vpop.f32.mrb[0].mxu0
        %v1055 = vadd.f32 %v894, %v1054
        %v1056 = vpop.f32.mrb[0].mxu0
        %v1057 = vpop.f32.mrb[0].mxu0
        %v1058 = vadd.f32 %v897, %v1057
        %v1059 = vpop.f32.mrb[0].mxu0
        %1060 = vmatprep.mubr.bf16.mxu0 %v546
        %1061 = vmatmul.mubr.bf16.gmra.mrb[0].mxu0 %v545
        %v1062 = vpop.f32.mrb[0].mxu0
        %v1063 = vadd.f32 %v902, %v1062
        %v1064 = vpop.f32.mrb[0].mxu0
        %v1065 = vpop.f32.mrb[0].mxu0
        %v1066 = vadd.f32 %v905, %v1065
        %v1067 = vpop.f32.mrb[0].mxu0
        %1068 = vmatprep.mubr.bf16.mxu0 %v550
        %1069 = vmatmul.mubr.bf16.gmra.mrb[0].mxu0 %v549
        %v1070 = vpop.f32.mrb[0].mxu0
        %v1071 = vadd.f32 %v910, %v1070
        %v1072 = vpop.f32.mrb[0].mxu0
        %v1073 = vpop.f32.mrb[0].mxu0
        %v1074 = vadd.f32 %v913, %v1073
        %v1075 = vpop.f32.mrb[0].mxu0
        %1076 = vmatprep.mubr.bf16.mxu0 %v554
        %1077 = vmatmul.mubr.bf16.gmra.mrb[0].mxu0 %v553
        %v1078 = vpop.f32.mrb[0].mxu0
        %v1079 = vadd.f32 %v918, %v1078
        %v1080 = vpop.f32.mrb[0].mxu0
        %v1081 = vpop.f32.mrb[0].mxu0
        %v1082 = vadd.f32 %v921, %v1081
        %v1083 = vpop.f32.mrb[0].mxu0
        %1084 = vmatprep.mubr.bf16.mxu0 %v558
        %1085 = vmatmul.mubr.bf16.gmra.mrb[0].mxu0 %v557
        %v1086 = vpop.f32.mrb[0].mxu0
        %v1087 = vadd.f32 %v926, %v1086
        %v1088 = vpop.f32.mrb[0].mxu0
        %v1089 = vpop.f32.mrb[0].mxu0
        %v1090 = vadd.f32 %v929, %v1089
        %v1091 = vpop.f32.mrb[0].mxu0
        %1092 = vmatprep.mubr.bf16.mxu0 %v562
        %1093 = vmatmul.mubr.bf16.gmra.mrb[0].mxu0 %v561
        %v1094 = vpop.f32.mrb[0].mxu0
        %v1095 = vadd.f32 %v934, %v1094
        %v1096 = vpop.f32.mrb[0].mxu0
        %v1097 = vpop.f32.mrb[0].mxu0
        %v1098 = vadd.f32 %v937, %v1097
        %v1099 = vpop.f32.mrb[0].mxu0
        %1100 = vmatprep.mubr.bf16.mxu0 %v566
        %1101 = vmatmul.mubr.bf16.gmra.mrb[0].mxu0 %v565
        %v1102 = vpop.f32.mrb[0].mxu0
        %v1103 = vadd.f32 %v942, %v1102
        %v1104 = vpop.f32.mrb[0].mxu0
        %v1105 = vpop.f32.mrb[0].mxu0
        %v1106 = vadd.f32 %v945, %v1105
        %v1107 = vpop.f32.mrb[0].mxu0
        %1108 = vmatprep.mubr.bf16.mxu0 %v570
        %1109 = vmatmul.mubr.bf16.gmra.mrb[0].mxu0 %v569
        %v1110 = vpop.f32.mrb[0].mxu0
        %v1111 = vadd.f32 %v950, %v1110
        %v1112 = vpop.f32.mrb[0].mxu0
        %v1113 = vpop.f32.mrb[0].mxu0
        %v1114 = vadd.f32 %v953, %v1113
        %v1115 = vpop.f32.mrb[0].mxu0
        %1116 = vmatprep.mubr.bf16.mxu0 %v574
        %1117 = vmatmul.mubr.bf16.gmra.mrb[0].mxu0 %v573
        %v1118 = vpop.f32.mrb[0].mxu0
        %v1119 = vadd.f32 %v958, %v1118
        %v1120 = vpop.f32.mrb[0].mxu0
        %v1121 = vpop.f32.mrb[0].mxu0
        %v1122 = vadd.f32 %v961, %v1121
        %v1123 = vpop.f32.mrb[0].mxu0
        %1124 = vmatprep.mubr.bf16.mxu0 %v578
        %1125 = vmatmul.mubr.bf16.gmra.mrb[0].mxu0 %v577
        %v1126 = vpop.f32.mrb[0].mxu0
        %v1127 = vadd.f32 %v966, %v1126
        %v1128 = vpop.f32.mrb[0].mxu0
        %v1129 = vpop.f32.mrb[0].mxu0
        %v1130 = vadd.f32 %v969, %v1129
        %v1131 = vpop.f32.mrb[0].mxu0
        %1132 = vmatprep.mubr.bf16.mxu0 %v582
        %1133 = vmatmul.mubr.bf16.gmra.mrb[0].mxu0 %v581
        %v1134 = vpop.f32.mrb[0].mxu0
        %v1135 = vadd.f32 %v974, %v1134
        %v1136 = vpop.f32.mrb[0].mxu0
        %v1137 = vpop.f32.mrb[0].mxu0
        %v1138 = vadd.f32 %v977, %v1137
        %v1139 = vpop.f32.mrb[0].mxu0
        %1140 = vmatprep.mubr.bf16.mxu0 %v586
        %1141 = vmatmul.mubr.bf16.gmra.mrb[0].mxu0 %v585
        %v1142 = vpop.f32.mrb[0].mxu0
        %v1143 = vadd.f32 %v982, %v1142
        %v1144 = vpop.f32.mrb[0].mxu0
        %v1145 = vpop.f32.mrb[0].mxu0
        %v1146 = vadd.f32 %v985, %v1145
        %v1147 = vpop.f32.mrb[0].mxu0
        %1148 = vmatprep.mubr.bf16.mxu0 %v590
        %1149 = vmatmul.mubr.bf16.gmra.mrb[0].mxu0 %v589
        %v1150 = vpop.f32.mrb[0].mxu0
        %v1151 = vadd.f32 %v990, %v1150
        %v1152 = vpop.f32.mrb[0].mxu0
        %v1153 = vpop.f32.mrb[0].mxu0
        %v1154 = vadd.f32 %v993, %v1153
        %v1155 = vpop.f32.mrb[0].mxu0
        %1156 = vmatprep.mubr.bf16.mxu0 %v594
        %1157 = vmatmul.mubr.bf16.gmra.mrb[0].mxu0 %v593
        %v1158 = vpop.f32.mrb[0].mxu0
        %v1159 = vadd.f32 %v998, %v1158
        %v1160 = vpop.f32.mrb[0].mxu0
        %v1161 = vpop.f32.mrb[0].mxu0
        %v1162 = vadd.f32 %v1001, %v1161
        %v1163 = vpop.f32.mrb[0].mxu0
        %1164 = vmatprep.mubr.bf16.mxu0 %v598
        %1165 = vmatmul.mubr.bf16.gmra.mrb[0].mxu0 %v597
        %v1166 = vpop.f32.mrb[0].mxu0
        %v1167 = vadd.f32 %v1006, %v1166
        %v1168 = vpop.f32.mrb[0].mxu0
        %v1169 = vpop.f32.mrb[0].mxu0
        %v1170 = vadd.f32 %v1009, %v1169
        %v1171 = vpop.f32.mrb[0].mxu0
        %1172 = vmatprep.mubr.bf16.mxu0 %v602
        %1173 = vmatmul.mubr.bf16.gmra.mrb[0].mxu0 %v601
        %v1174 = vpop.f32.mrb[0].mxu0
        %v1175 = vadd.f32 %v1014, %v1174
        %v1176 = vpop.f32.mrb[0].mxu0
        %v1177 = vpop.f32.mrb[0].mxu0
        %v1178 = vadd.f32 %v1017, %v1177
        %v1179 = vpop.f32.mrb[0].mxu0
        %1180 = vdwg.mxu0
        %v1181 = vpack.c.bf16 %v1058, %v1055
        %v1182 = vpack.c.bf16 %v1066, %v1063
        %v1183 = vpack.c.bf16 %v1074, %v1071
        %v1184 = vpack.c.bf16 %v1082, %v1079
        %v1185 = vpack.c.bf16 %v1090, %v1087
        %v1186 = vpack.c.bf16 %v1098, %v1095
        %v1187 = vpack.c.bf16 %v1106, %v1103
        %v1188 = vpack.c.bf16 %v1114, %v1111
        %v1189 = vpack.c.bf16 %v1122, %v1119
        %v1190 = vpack.c.bf16 %v1130, %v1127
        %v1191 = vpack.c.bf16 %v1138, %v1135
        %v1192 = vpack.c.bf16 %v1146, %v1143
        %v1193 = vpack.c.bf16 %v1154, %v1151
        %v1194 = vpack.c.bf16 %v1162, %v1159
        %v1195 = vpack.c.bf16 %v1170, %v1167
        %v1196 = vpack.c.bf16 %v1178, %v1175
        %v1213 = vunpack.c.l.b16 %v1181
        %v1214 = vunpack.c.h.b16 %v1181
        %v1215 = vunpack.c.l.b16 %v1182
        %v1216 = vunpack.c.h.b16 %v1182
        %v1217 = vunpack.c.l.b16 %v1183
        %v1218 = vunpack.c.h.b16 %v1183
        %v1219 = vunpack.c.l.b16 %v1184
        %v1220 = vunpack.c.h.b16 %v1184
        %v1221 = vunpack.c.l.b16 %v1185
        %v1222 = vunpack.c.h.b16 %v1185
        %v1223 = vunpack.c.l.b16 %v1186
        %v1224 = vunpack.c.h.b16 %v1186
        %v1225 = vunpack.c.l.b16 %v1187
        %v1226 = vunpack.c.h.b16 %v1187
        %v1227 = vunpack.c.l.b16 %v1188
        %v1228 = vunpack.c.h.b16 %v1188
        %v1229 = vunpack.c.l.b16 %v1189
        %v1230 = vunpack.c.h.b16 %v1189
        %v1231 = vunpack.c.l.b16 %v1190
        %v1232 = vunpack.c.h.b16 %v1190
        %v1233 = vunpack.c.l.b16 %v1191
        %v1234 = vunpack.c.h.b16 %v1191
        %v1235 = vunpack.c.l.b16 %v1192
        %v1236 = vunpack.c.h.b16 %v1192
        %v1237 = vunpack.c.l.b16 %v1193
        %v1238 = vunpack.c.h.b16 %v1193
        %v1239 = vunpack.c.l.b16 %v1194
        %v1240 = vunpack.c.h.b16 %v1194
        %v1241 = vunpack.c.l.b16 %v1195
        %v1242 = vunpack.c.h.b16 %v1195
        %v1243 = vunpack.c.l.b16 %v1196
        %v1244 = vunpack.c.h.b16 %v1196
        %v1245 = vpack.c.b16 %v1213, %v1213
        %v1246 = vpack.c.b16 %v1214, %v1214
        %v1247 = vpack.c.b16 %v1215, %v1215
        %v1248 = vpack.c.b16 %v1216, %v1216
        %v1249 = vpack.c.b16 %v1217, %v1217
        %v1250 = vpack.c.b16 %v1218, %v1218
        %v1251 = vpack.c.b16 %v1219, %v1219
        %v1252 = vpack.c.b16 %v1220, %v1220
        %v1253 = vpack.c.b16 %v1221, %v1221
        %v1254 = vpack.c.b16 %v1222, %v1222
        %v1255 = vpack.c.b16 %v1223, %v1223
        %v1256 = vpack.c.b16 %v1224, %v1224
        %v1257 = vpack.c.b16 %v1225, %v1225
        %v1258 = vpack.c.b16 %v1226, %v1226
        %v1259 = vpack.c.b16 %v1227, %v1227
        %v1260 = vpack.c.b16 %v1228, %v1228
        %v1261 = vpack.c.b16 %v1229, %v1229
        %v1262 = vpack.c.b16 %v1230, %v1230
        %v1263 = vpack.c.b16 %v1231, %v1231
        %v1264 = vpack.c.b16 %v1232, %v1232
        %v1265 = vpack.c.b16 %v1233, %v1233
        %v1266 = vpack.c.b16 %v1234, %v1234
        %v1267 = vpack.c.b16 %v1235, %v1235
        %v1268 = vpack.c.b16 %v1236, %v1236
        %v1269 = vpack.c.b16 %v1237, %v1237
        %v1270 = vpack.c.b16 %v1238, %v1238
        %v1271 = vpack.c.b16 %v1239, %v1239
        %v1272 = vpack.c.b16 %v1240, %v1240
        %v1273 = vpack.c.b16 %v1241, %v1241
        %v1274 = vpack.c.b16 %v1242, %v1242
        %v1275 = vpack.c.b16 %v1243, %v1243
        %v1276 = vpack.c.b16 %v1244, %v1244
        %1309 = vst [vmem:[%s208] sm:$0xf] %v1245
        %1310 = vst [vmem:[%s208 + $0x4] sm:$0xf] %v1246
        %1311 = vst [vmem:[%s208 + $0x8] sm:$0xf] %v1247
        %1312 = vst [vmem:[%s208 + $0xc] sm:$0xf] %v1248
        %1313 = vst [vmem:[%s208 + $0x10] sm:$0xf] %v1249
        %1314 = vst [vmem:[%s208 + $0x14] sm:$0xf] %v1250
        %1315 = vst [vmem:[%s208 + $0x18] sm:$0xf] %v1251
        %1316 = vst [vmem:[%s208 + $0x1c] sm:$0xf] %v1252
        %1317 = vst [vmem:[%s208 + $0x20] sm:$0xf] %v1253
        %1318 = vst [vmem:[%s208 + $0x24] sm:$0xf] %v1254
        %1319 = vst [vmem:[%s208 + $0x28] sm:$0xf] %v1255
        %1320 = vst [vmem:[%s208 + $0x2c] sm:$0xf] %v1256
        %1321 = vst [vmem:[%s208 + $0x30] sm:$0xf] %v1257
        %1322 = vst [vmem:[%s208 + $0x34] sm:$0xf] %v1258
        %1323 = vst [vmem:[%s208 + $0x38] sm:$0xf] %v1259
        %1324 = vst [vmem:[%s208 + $0x3c] sm:$0xf] %v1260
        %1325 = vst [vmem:[%s208 + $0x40] sm:$0xf] %v1261
        %1326 = vst [vmem:[%s208 + $0x44] sm:$0xf] %v1262
        %1327 = vst [vmem:[%s208 + $0x48] sm:$0xf] %v1263
        %1328 = vst [vmem:[%s208 + $0x4c] sm:$0xf] %v1264
        %1329 = vst [vmem:[%s208 + $0x50] sm:$0xf] %v1265
        %1330 = vst [vmem:[%s208 + $0x54] sm:$0xf] %v1266
        %1331 = vst [vmem:[%s208 + $0x58] sm:$0xf] %v1267
        %1332 = vst [vmem:[%s208 + $0x5c] sm:$0xf] %v1268
        %1333 = vst [vmem:[%s208 + $0x60] sm:$0xf] %v1269
        %1334 = vst [vmem:[%s208 + $0x64] sm:$0xf] %v1270
        %1335 = vst [vmem:[%s208 + $0x68] sm:$0xf] %v1271
        %1336 = vst [vmem:[%s208 + $0x6c] sm:$0xf] %v1272
        %1337 = vst [vmem:[%s208 + $0x70] sm:$0xf] %v1273
        %1338 = vst [vmem:[%s208 + $0x74] sm:$0xf] %v1274
        %1339 = vst [vmem:[%s208 + $0x78] sm:$0xf] %v1275
        %1340 = vst [vmem:[%s208 + $0x7c] sm:$0xf] %v1276
        %v1341 = vadd.f32 %v1055, %v1058
        %v1342 = vadd.f32 %v1341, %v1063
        %v1343 = vadd.f32 %v1342, %v1066
        %v1344 = vadd.f32 %v1343, %v1071
        %v1345 = vadd.f32 %v1344, %v1074
        %v1346 = vadd.f32 %v1345, %v1079
        %v1347 = vadd.f32 %v1346, %v1082
        %v1348 = vadd.f32 %v1347, %v1087
        %v1349 = vadd.f32 %v1348, %v1090
        %v1350 = vadd.f32 %v1349, %v1095
        %v1351 = vadd.f32 %v1350, %v1098
        %v1352 = vadd.f32 %v1351, %v1103
        %v1353 = vadd.f32 %v1352, %v1106
        %v1354 = vadd.f32 %v1353, %v1111
        %v1355 = vadd.f32 %v1354, %v1114
        %v1356 = vadd.f32 %v1355, %v1119
        %v1357 = vadd.f32 %v1356, %v1122
        %v1358 = vadd.f32 %v1357, %v1127
        %v1359 = vadd.f32 %v1358, %v1130
        %v1360 = vadd.f32 %v1359, %v1135
        %v1361 = vadd.f32 %v1360, %v1138
        %v1362 = vadd.f32 %v1361, %v1143
        %v1363 = vadd.f32 %v1362, %v1146
        %v1364 = vadd.f32 %v1363, %v1151
        %v1365 = vadd.f32 %v1364, %v1154
        %v1366 = vadd.f32 %v1365, %v1159
        %v1367 = vadd.f32 %v1366, %v1162
        %v1368 = vadd.f32 %v1367, %v1167
        %v1369 = vadd.f32 %v1368, %v1170
        %v1370 = vadd.f32 %v1369, %v1175
        %v1371 = vadd.f32 %v1370, %v1178
        %v1372 = vrot.slane %v1371, 4
        %v1373 = vadd.f32 %v1371, %v1372
        %v1374 = vrot.slane %v1373, 2
        %v1375 = vadd.f32 %v1373, %v1374
        %v1376 = vrot.slane %v1375, 1
        %v1377 = vadd.f32 %v1375, %v1376
        %1378 = vst [vmem:[%s215] sm:$0x1] %v1377
        %v1379 = vmul.f32 %v1055, %v1055
        %v1380 = vmul.f32 %v1058, %v1058
        %v1381 = vmul.f32 %v1063, %v1063
        %v1382 = vmul.f32 %v1066, %v1066
        %v1383 = vmul.f32 %v1071, %v1071
        %v1384 = vmul.f32 %v1074, %v1074
        %v1385 = vmul.f32 %v1079, %v1079
        %v1386 = vmul.f32 %v1082, %v1082
        %v1387 = vmul.f32 %v1087, %v1087
        %v1388 = vmul.f32 %v1090, %v1090
        %v1389 = vmul.f32 %v1095, %v1095
        %v1390 = vmul.f32 %v1098, %v1098
        %v1391 = vmul.f32 %v1103, %v1103
        %v1392 = vmul.f32 %v1106, %v1106
        %v1393 = vmul.f32 %v1111, %v1111
        %v1394 = vmul.f32 %v1114, %v1114
        %v1395 = vmul.f32 %v1119, %v1119
        %v1396 = vmul.f32 %v1122, %v1122
        %v1397 = vmul.f32 %v1127, %v1127
        %v1398 = vmul.f32 %v1130, %v1130
        %v1399 = vmul.f32 %v1135, %v1135
        %v1400 = vmul.f32 %v1138, %v1138
        %v1401 = vmul.f32 %v1143, %v1143
        %v1402 = vmul.f32 %v1146, %v1146
        %v1403 = vmul.f32 %v1151, %v1151
        %v1404 = vmul.f32 %v1154, %v1154
        %v1405 = vmul.f32 %v1159, %v1159
        %v1406 = vmul.f32 %v1162, %v1162
        %v1407 = vmul.f32 %v1167, %v1167
        %v1408 = vmul.f32 %v1170, %v1170
        %v1409 = vmul.f32 %v1175, %v1175
        %v1410 = vmul.f32 %v1178, %v1178
        %v1411 = vadd.f32 %v1379, %v1380
        %v1412 = vadd.f32 %v1411, %v1381
        %v1413 = vadd.f32 %v1412, %v1382
        %v1414 = vadd.f32 %v1413, %v1383
        %v1415 = vadd.f32 %v1414, %v1384
        %v1416 = vadd.f32 %v1415, %v1385
        %v1417 = vadd.f32 %v1416, %v1386
        %v1418 = vadd.f32 %v1417, %v1387
        %v1419 = vadd.f32 %v1418, %v1388
        %v1420 = vadd.f32 %v1419, %v1389
        %v1421 = vadd.f32 %v1420, %v1390
        %v1422 = vadd.f32 %v1421, %v1391
        %v1423 = vadd.f32 %v1422, %v1392
        %v1424 = vadd.f32 %v1423, %v1393
        %v1425 = vadd.f32 %v1424, %v1394
        %v1426 = vadd.f32 %v1425, %v1395
        %v1427 = vadd.f32 %v1426, %v1396
        %v1428 = vadd.f32 %v1427, %v1397
        %v1429 = vadd.f32 %v1428, %v1398
        %v1430 = vadd.f32 %v1429, %v1399
        %v1431 = vadd.f32 %v1430, %v1400
        %v1432 = vadd.f32 %v1431, %v1401
        %v1433 = vadd.f32 %v1432, %v1402
        %v1434 = vadd.f32 %v1433, %v1403
        %v1435 = vadd.f32 %v1434, %v1404
        %v1436 = vadd.f32 %v1435, %v1405
        %v1437 = vadd.f32 %v1436, %v1406
        %v1438 = vadd.f32 %v1437, %v1407
        %v1439 = vadd.f32 %v1438, %v1408
        %v1440 = vadd.f32 %v1439, %v1409
        %v1441 = vadd.f32 %v1440, %v1410
        %v1442 = vrot.slane %v1441, 4
        %v1443 = vadd.f32 %v1441, %v1442
        %v1444 = vrot.slane %v1443, 2
        %v1445 = vadd.f32 %v1443, %v1444
        %v1446 = vrot.slane %v1445, 1
        %v1447 = vadd.f32 %v1445, %v1446
        %1448 = vst [vmem:[%s215 + $0x1] sm:$0x1] %v1447
        %s1449 = sand.u32 %s80, 1
        %s1450 = scalar_lea.sflag [#allocation4], %s1449
        %s1451 = sand.u32 %s80, 1
        %s1452 = smul.addr %s1451, 128
        %s1453 = scalar_lea.vmem [#allocation7], %s1452
        %s1454 = sand.u32 %s106, 1
        %s1455 = scalar_lea.sflag [#allocation9], %s1454
        %s1456 = sand.u32 %s106, 1
        %s1457 = smul.addr %s1456, 2
        %s1458 = scalar_lea.vmem [#allocation8], %s1457
        // Predicated region
        $region37: #{tpu_custom_call.1} parent=27 // pred_check
          %p1459 = pneg %p90
        $region38: #{tpu_custom_call.1} parent=27 // pred_check_branch
          %1461 = sbr.rel (%p1459) target = $region40
        $region39: #{tpu_custom_call.1} parent=27 // pred_region
          %s1462 = smul.u32 32, %s25
          %s1464 = ssub.s32 2048, 2048
          %1465 = vsyncadd %s1450, %s1464
          %s1466 = smul.addr %s1462, 64
          %s1467 = scalar_lea.hbm %s2, %s1466
          %s1468 = sshll.u32 %s1453, 4
          %s1469 = int_to_ptr.vmem [resolvable:$true] %s1468
          %1474 = dma.vmem_to_hbm [thread:$0]  %s1469, 2048, %s1467, %s1450, 64, 64, 4
        $region40: #{tpu_custom_call.1} parent=27 // pred_fallthru
          _
        // Predicated region
        $region41: #{tpu_custom_call.1} parent=27 // pred_check
          %p1475 = pneg %p116
        $region42: #{tpu_custom_call.1} parent=27 // pred_check_branch
          %1477 = sbr.rel (%p1475) target = $region44
        $region43: #{tpu_custom_call.1} parent=27 // pred_region
          %s1479 = ssub.s32 32, 32
          %1480 = vsyncadd %s1455, %s1479
          %s1481 = smul.addr %s25, 32
          %s1482 = scalar_lea.hbm %s3, %s1481
          %s1484 = sshll.u32 %s1458, 4
          %s1485 = int_to_ptr.vmem [resolvable:$true] %s1484
          %1487 = dma.vmem_to_hbm [thread:$0]  %s1485, 32, %s1482, %s1455
        $region44: #{tpu_custom_call.1} parent=27 // pred_fallthru
          _
      $region28: #{tpu_custom_call.1} parent=5 // pred_fallthru
        _
      %p1488 = scmp.le.s32.totalorder 2, %s20
      // Predicated region
      $region45: #{tpu_custom_call.1} parent=5 // pred_check
        %p1489 = pneg %p1488
      $region46: #{tpu_custom_call.1} parent=5 // pred_check_branch
        %1491 = sbr.rel (%p1489) target = $region48
      $region47: #{tpu_custom_call.1} parent=5 // pred_region
        %s1492 = ssub.s32 %s20, 2
        // Predicated region
        $region49: #{tpu_custom_call.1} parent=47 // pred_check
          %p1493 = pneg %p96
        $region50: #{tpu_custom_call.1} parent=47 // pred_check_branch
          %1495 = sbr.rel (%p1493) target = $region52
        $region51: #{tpu_custom_call.1} parent=47 // pred_region
          %s1496 = sand.u32 %s81, 1
          %s1497 = scalar_lea.sflag [#allocation4], %s1496
          %s1498 = sand.u32 %s81, 1
          %s1499 = smul.addr %s1498, 128
          %s1500 = scalar_lea.vmem [#allocation7], %s1499
          %1501 = dma.done %s1497, 2048
        $region52: #{tpu_custom_call.1} parent=47 // pred_fallthru
          _
        // Predicated region
        $region53: #{tpu_custom_call.1} parent=47 // pred_check
          %p1502 = pneg %p122
        $region54: #{tpu_custom_call.1} parent=47 // pred_check_branch
          %1504 = sbr.rel (%p1502) target = $region56
        $region55: #{tpu_custom_call.1} parent=47 // pred_region
          %s1505 = sand.u32 %s107, 1
          %s1506 = scalar_lea.sflag [#allocation9], %s1505
          %s1507 = sand.u32 %s107, 1
          %s1508 = smul.addr %s1507, 2
          %s1509 = scalar_lea.vmem [#allocation8], %s1508
          %1510 = dma.done %s1506, 32
        $region56: #{tpu_custom_call.1} parent=47 // pred_fallthru
          _
      $region48: #{tpu_custom_call.1} parent=5 // pred_fallthru
        _
    $region6: #{tpu_custom_call.1} parent=1 // loop_footer
      %s24 = sadd.s32 1, %s20
    $region7: #{tpu_custom_call.1} parent=1 // loop_footer_branch
      %19 = sbr.rel target = $region3
    $region8: #{tpu_custom_call.1} parent=1 // loop_exit
      _
    %1511 = vsyncpa [#allocation3], 1
    %s1512 = scalar_lea.sflag [#allocation3], 1
    %1513 = vsyncpa %s1512, 1
    %1514 = vsyncpa [#allocation6], 1
    %1515 = vsyncpa [#allocation4], 1
    %s1516 = scalar_lea.sflag [#allocation4], 1
    %1517 = vsyncpa %s1516, 1
    %1518 = vsyncpa [#allocation9], 1
    %s1519 = scalar_lea.sflag [#allocation9], 1
    %1520 = vsyncpa %s1519, 1

</llo_original>
